<compile_context>
chip_gen: v6e
topology: v6e:2x2x1
jax: 0.10.0
libtpu: 0.0.40
codegen_flags: <defaults>
</compile_context>

<pallas_src>
import jax
import jax.numpy as jnp
from jax.experimental import pallas as pl
from jax.experimental.pallas import tpu as pltpu


def _vmem_budget():
    """(seq-tile target bytes, scoped vmem_limit_bytes) per TPU generation.

    Conservative defaults are safe on every generation (v7x: 64 MiB VMEM);
    v5e / v6e (128 MiB VMEM) get larger tiles + a higher scoped limit.
    """
    target, limit = 4 * 1024 * 1024, 32 * 1024 * 1024
    cap = None
    try:
        cap = getattr(pltpu.get_tpu_info(), "vmem_capacity_bytes", None)
    except Exception:
        cap = None
    if cap is None:
        try:
            kind = jax.devices()[0].device_kind.lower()
            if "tpu" in kind and "v7" not in kind:
                cap = 128 * 1024 * 1024
        except Exception:
            cap = None
    if cap is not None and cap >= 96 * 1024 * 1024:
        target, limit = 12 * 1024 * 1024, 64 * 1024 * 1024
    return target, limit


def _pick_seq_tile(seq_len, row_bytes, target_bytes, min_tiles=1):
    """Largest multiple-of-8 sequence tile whose double-buffered working set
    stays near `target_bytes`; optionally capped so there are >= min_tiles
    grid steps (keeps both v7x TensorCores busy when B == 1)."""
    if seq_len <= 8:
        return max(seq_len, 1)
    st = max(8, min(seq_len, target_bytes // max(row_bytes, 1), 2048))
    st = max(8, (st // 8) * 8)
    if min_tiles > 1:
        cap = -(-seq_len // min_tiles)          # ceil(seq_len / min_tiles)
        cap = max(8, ((cap + 7) // 8) * 8)
        st = min(st, cap)
    return st


def _make_rope_kernel(q_cfg, k_cfg, head_dim, compute_dtype):
    """q_cfg / k_cfg = (path, n_heads) with path in {"4d", "2d"}."""
    paths = (q_cfg, k_cfg)

    def kernel(cos_ref, sin_ref, xq_ref, xk_ref, oq_ref, ok_ref):
        # cos arrives interleaved (c0,c0,c1,c1,...); sin arrives interleaved
        # AND sign-folded (-s0,+s0,-s1,+s1,...), both already in compute_dtype.
        c = cos_ref[...]                                   # (St, D)
        s = sin_ref[...]                                   # (St, D)

        # Hoisted lane-parity masks: tiny (1, width) rows, reused by both
        # tensors (no full-tile iota / bool temporaries).
        if any(p == "4d" for p, _ in paths):
            lane_d = jax.lax.broadcasted_iota(jnp.int32, (1, head_dim), 1)
            even_d = (lane_d & 1) == 0                     # (1, D)
        merged = [h for (p, h) in paths if p == "2d"]
        if merged:
            hm = max(merged)
            wm = hm * head_dim
            lane_m = jax.lax.broadcasted_iota(jnp.int32, (1, wm), 1)
            even_m = (lane_m & 1) == 0                     # (1, hm*D)
            # Lane-tiled cos/sin, built once at the widest merged width and
            # statically sliced for the narrower tensor.
            c2 = c if hm == 1 else jnp.concatenate([c] * hm, axis=-1)
            s2 = s if hm == 1 else jnp.concatenate([s] * hm, axis=-1)

        def rotate(x_ref, o_ref, cfg):
            path, h = cfg
            x = x_ref[...]
            if x.dtype != compute_dtype:
                x = x.astype(compute_dtype)
            if path == "4d":
                # x: (St, H, D).  Within-vreg lane rotates over D; cos/sin
                # broadcast over the head (sublane) axis -- no materialized
                # (St, H*D) frequency copies.
                x_next = pltpu.roll(x, head_dim - 1, 2)    # x[..., j + 1]
                x_prev = pltpu.roll(x, 1, 2)               # x[..., j - 1]
                partner = jnp.where(even_d[:, None, :], x_next, x_prev)
                out = x * c[:, None, :] + partner * s[:, None, :]
            else:
                # x: (St, H*D) lane-merged.  Pairs never straddle a head
                # boundary, so a +/-1 lane rotate over the full width is safe.
                n = h * head_dim
                x_next = pltpu.roll(x, n - 1, 1)           # x[..., j + 1]
                x_prev = pltpu.roll(x, 1, 1)               # x[..., j - 1]
                partner = jnp.where(even_m[:, :n], x_next, x_prev)
                out = x * c2[:, :n] + partner * s2[:, :n]
            # Single contiguous store per block.
            o_ref[...] = out.astype(o_ref.dtype)

        rotate(xq_ref, oq_ref, q_cfg)
        rotate(xk_ref, ok_ref, k_cfg)

    return kernel


def vk_rotary_embedding(xq, xk, freqs_cos, freqs_sin):
    """Forward of VkRotaryEmbedding: returns (xq_out, xk_out).

    xq: [B, S, Hq, D], xk: [B, S, Hk, D], freqs_cos/freqs_sin: [S, D//2].
    """
    B, S, Hq, D = xq.shape
    Bk, Sk, Hk, Dk = xk.shape
    assert (Bk, Sk, Dk) == (B, S, D)
    assert D % 2 == 0
    assert freqs_cos.shape == (S, D // 2) and freqs_sin.shape == (S, D // 2)
    assert xq.dtype == xk.dtype

    # bf16 math on bf16 inputs (native VPU on v6e/v7x), f32 otherwise.
    compute_dtype = jnp.bfloat16 if xq.dtype == jnp.bfloat16 else jnp.float32

    # Per-tensor layout: keep the native 4-D (head-on-sublane) layout when the
    # (H, D) tile is dense; merge heads into the lane axis otherwise.
    def _path(h):
        return "4d" if (h >= 8 and D % 128 == 0) else "2d"

    q_cfg = (_path(Hq), Hq)
    k_cfg = (_path(Hk), Hk)

    # Expand [S, D//2] -> [S, D] interleaved (c0,c0,c1,c1,...) and fold the
    # rotation sign into sin (-s0,+s0,...).  Tiny host-side ops.
    cos_e = jnp.repeat(freqs_cos, 2, axis=-1).astype(compute_dtype)
    sign = jnp.tile(jnp.asarray([-1.0, 1.0], dtype=jnp.float32), D // 2)
    sin_e = (jnp.repeat(freqs_sin, 2, axis=-1) * sign).astype(compute_dtype)

    x_bytes = jnp.dtype(xq.dtype).itemsize
    cd_bytes = jnp.dtype(compute_dtype).itemsize
    # Double-buffered pipeline tiles (in+out for q and k, cos+sin) plus a
    # rough allowance for in-kernel temporaries (rolls / partner / products).
    row_bytes = (2 * (2 * (Hq + Hk) * D * x_bytes + 2 * D * cd_bytes)
                 + 4 * (Hq + Hk) * D * cd_bytes)
    target_bytes, vmem_limit = _vmem_budget()
    min_tiles = 2 if B == 1 else 1          # >= 2 parallel steps for v7x 2-TC
    St = _pick_seq_tile(S, row_bytes, target_bytes, min_tiles)
    ns = pl.cdiv(S, St)

    # Grid (s_tiles, B): b innermost so cos/sin blocks stay resident across
    # the batch; both axes parallel for megacore sharding.
    cos_spec = pl.BlockSpec((St, D), lambda s, b: (s, 0))

    def _x_spec_shape(cfg):
        path, h = cfg
        if path == "4d":
            return (pl.BlockSpec((None, St, h, D), lambda s, b: (b, s, 0, 0)),
                    (B, S, h, D))
        return (pl.BlockSpec((None, St, h * D), lambda s, b: (b, s, 0)),
                (B, S, h * D))

    xq_spec, oq_shape = _x_spec_shape(q_cfg)
    xk_spec, ok_shape = _x_spec_shape(k_cfg)

    # Free reshapes (merge trailing contiguous dims) only for the merged path.
    xq_in = xq if q_cfg[0] == "4d" else xq.reshape(B, S, Hq * D)
    xk_in = xk if k_cfg[0] == "4d" else xk.reshape(B, S, Hk * D)

    total = B * S * (Hq + Hk) * D
    cost = pl.CostEstimate(
        flops=4 * total,
        transcendentals=0,
        bytes_accessed=2 * total * x_bytes + 2 * S * D * cd_bytes,
    )

    oq, ok = pl.pallas_call(
        _make_rope_kernel(q_cfg, k_cfg, D, compute_dtype),
        grid=(ns, B),
        in_specs=[cos_spec, cos_spec, xq_spec, xk_spec],
        out_specs=[xq_spec, xk_spec],
        out_shape=[
            jax.ShapeDtypeStruct(oq_shape, xq.dtype),
            jax.ShapeDtypeStruct(ok_shape, xk.dtype),
        ],
        compiler_params=pltpu.CompilerParams(
            dimension_semantics=("parallel", "parallel"),
            vmem_limit_bytes=vmem_limit,
        ),
        cost_estimate=cost,
    )(cos_e, sin_e, xq_in, xk_in)

    return oq.reshape(B, S, Hq, D), ok.reshape(B, S, Hk, D)


# ---------------- pure-JAX reference (mirrors the torch op) ----------------
def _rope_reference(x, freqs_cos, freqs_sin):
    B, S, H, D = x.shape
    xf = x.astype(jnp.float32).reshape(B, S, H, D // 2, 2)
    x_r, x_i = xf[..., 0], xf[..., 1]
    c = freqs_cos.astype(jnp.float32).reshape(1, S, 1, D // 2)
    s = freqs_sin.astype(jnp.float32).reshape(1, S, 1, D // 2)
    out_r = x_r * c - x_i * s
    out_i = x_r * s + x_i * c
    out = jnp.stack([out_r, out_i], axis=-1).reshape(B, S, H, D)
    return out.astype(x.dtype)


def _make_freqs(S, D, dtype=jnp.float32):
    Dh = D // 2
    inv_freq = 1.0 / (10000.0 ** (jnp.arange(0, Dh, dtype=jnp.float32) / Dh))
    t = jnp.arange(S, dtype=jnp.float32)
    angles = jnp.outer(t, inv_freq)                       # [S, Dh]
    return jnp.cos(angles).astype(dtype), jnp.sin(angles).astype(dtype)


if __name__ == "__main__":
    rope = jax.jit(vk_rotary_embedding)
    key = jax.random.PRNGKey(0)

    # Case 1: small GQA shape (merged lane path), consistent with the module.
    B, S, Hq, Hk, D = 2, 8, 4, 2, 32
    kq, kk, key = jax.random.split(key, 3)
    xq = jax.random.normal(kq, (B, S, Hq, D), dtype=jnp.float32)
    xk = jax.random.normal(kk, (B, S, Hk, D), dtype=jnp.float32)
    fc, fs = _make_freqs(S, D)
    xq_out, xk_out = rope(xq, xk, fc, fs)
    jax.block_until_ready((xq_out, xk_out))
    assert xq_out.shape == xq.shape and xq_out.dtype == xq.dtype
    assert xk_out.shape == xk.shape and xk_out.dtype == xk.dtype
    assert jnp.allclose(xq_out, _rope_reference(xq, fc, fs), atol=1e-5, rtol=1e-5)
    assert jnp.allclose(xk_out, _rope_reference(xk, fc, fs), atol=1e-5, rtol=1e-5)

    # Case 2: llama-like D=128 with >=8 heads (4-D head-broadcast path),
    # B == 1 to exercise the >=2-tile split for v7x megacore.
    B2, S2, Hq2, Hk2, D2 = 1, 16, 8, 8, 128
    kq2, kk2, key = jax.random.split(key, 3)
    xq2 = jax.random.normal(kq2, (B2, S2, Hq2, D2), dtype=jnp.float32)
    xk2 = jax.random.normal(kk2, (B2, S2, Hk2, D2), dtype=jnp.float32)
    fc2, fs2 = _make_freqs(S2, D2)
    xq2_out, xk2_out = jax.jit(vk_rotary_embedding)(xq2, xk2, fc2, fs2)
    jax.block_until_ready((xq2_out, xk2_out))
    assert jnp.allclose(xq2_out, _rope_reference(xq2, fc2, fs2), atol=1e-5, rtol=1e-5)
    assert jnp.allclose(xk2_out, _rope_reference(xk2, fc2, fs2), atol=1e-5, rtol=1e-5)

    print("KERNEL_OK")
</pallas_src>

<mosaic_0001>
module attributes {stable_mosaic.version = 11 : i64} {
  func.func @kernel(%arg0: i32, %arg1: i32, %arg2: memref<8x32xf32, #tpu.memory_space<vmem>>, %arg3: memref<8x32xf32, #tpu.memory_space<vmem>>, %arg4: memref<1x8x128xf32, #tpu.memory_space<vmem>>, %arg5: memref<1x8x64xf32, #tpu.memory_space<vmem>>, %arg6: memref<1x8x128xf32, #tpu.memory_space<vmem>>, %arg7: memref<1x8x64xf32, #tpu.memory_space<vmem>>) attributes {dimension_semantics = [#tpu.dimension_semantics<parallel>, #tpu.dimension_semantics<parallel>], iteration_bounds = array<i64: 1, 2>, scalar_prefetch = 0 : i64, scratch_operands = 0 : i64, tpu.core_type = #tpu.core_type<tc>, window_params = [{transform_indices = @transform_0, window_bounds = array<i64: 8, 32>}, {transform_indices = @transform_1, window_bounds = array<i64: 8, 32>}, {transform_indices = @transform_2, window_bounds = array<i64: 1, 8, 128>}, {transform_indices = @transform_3, window_bounds = array<i64: 1, 8, 64>}, {transform_indices = @transform_4, window_bounds = array<i64: 1, 8, 128>}, {transform_indices = @transform_5, window_bounds = array<i64: 1, 8, 64>}]} {
    %c0 = arith.constant 0 : index
    %c0_0 = arith.constant 0 : index
    %0 = vector.load %arg2[%c0, %c0_0] : memref<8x32xf32, #tpu.memory_space<vmem>>, vector<8x32xf32>
    %c0_1 = arith.constant 0 : index
    %c0_2 = arith.constant 0 : index
    %1 = vector.load %arg3[%c0_1, %c0_2] : memref<8x32xf32, #tpu.memory_space<vmem>>, vector<8x32xf32>
    %2 = tpu.iota {dimensions = array<i32: 1>} : vector<1x128xi32>
    %c1_i32 = arith.constant 1 : i32
    %3 = vector.broadcast %c1_i32 : i32 to vector<1x128xi32>
    %4 = arith.andi %2, %3 : vector<1x128xi32>
    %c0_i32 = arith.constant 0 : i32
    %5 = vector.broadcast %c0_i32 : i32 to vector<1x128xi32>
    %6 = arith.cmpi eq, %4, %5 : vector<1x128xi32>
    %7 = tpu.concatenate %0, %0, %0, %0 in 1 : vector<8x32xf32>, vector<8x32xf32>, vector<8x32xf32>, vector<8x32xf32> -> vector<8x128xf32>
    %8 = tpu.concatenate %1, %1, %1, %1 in 1 : vector<8x32xf32>, vector<8x32xf32>, vector<8x32xf32>, vector<8x32xf32> -> vector<8x128xf32>
    %c0_3 = arith.constant 0 : index
    %c0_4 = arith.constant 0 : index
    %c0_5 = arith.constant 0 : index
    %9 = vector.load %arg4[%c0_3, %c0_4, %c0_5] : memref<1x8x128xf32, #tpu.memory_space<vmem>>, vector<1x8x128xf32>
    %10 = vector.shape_cast %9 : vector<1x8x128xf32> to vector<8x128xf32>
    %c127_i32 = arith.constant 127 : i32
    %11 = tpu.dynamic_rotate %10 by %c127_i32 dim 1 : vector<8x128xf32>, i32 -> vector<8x128xf32>
    %c1_i32_6 = arith.constant 1 : i32
    %12 = tpu.dynamic_rotate %10 by %c1_i32_6 dim 1 : vector<8x128xf32>, i32 -> vector<8x128xf32>
    %13 = vector.shape_cast %6 : vector<1x128xi1> to vector<1x128xi1>
    %14 = vector.broadcast %13 : vector<1x128xi1> to vector<8x128xi1>
    %15 = arith.select %14, %11, %12 : vector<8x128xi1>, vector<8x128xf32>
    %16 = arith.mulf %10, %7 : vector<8x128xf32>
    %17 = arith.mulf %15, %8 : vector<8x128xf32>
    %18 = arith.addf %16, %17 : vector<8x128xf32>
    %c0_7 = arith.constant 0 : index
    %c0_8 = arith.constant 0 : index
    %c0_9 = arith.constant 0 : index
    %19 = vector.load %arg6[%c0_7, %c0_8, %c0_9] : memref<1x8x128xf32, #tpu.memory_space<vmem>>, vector<1x8x128xf32>
    %20 = vector.shape_cast %19 : vector<1x8x128xf32> to vector<8x128xf32>
    %21 = vector.shape_cast %18 : vector<8x128xf32> to vector<1x8x128xf32>
    tpu.vector_store %arg6[%c0_7, %c0_8, %c0_9], %21 {strides = array<i32>} : memref<1x8x128xf32, #tpu.memory_space<vmem>>, vector<1x8x128xf32>,
    %c0_10 = arith.constant 0 : index
    %c0_11 = arith.constant 0 : index
    %c0_12 = arith.constant 0 : index
    %22 = vector.load %arg5[%c0_10, %c0_11, %c0_12] : memref<1x8x64xf32, #tpu.memory_space<vmem>>, vector<1x8x64xf32>
    %23 = vector.shape_cast %22 : vector<1x8x64xf32> to vector<8x64xf32>
    %c63_i32 = arith.constant 63 : i32
    %24 = tpu.dynamic_rotate %23 by %c63_i32 dim 1 : vector<8x64xf32>, i32 -> vector<8x64xf32>
    %c1_i32_13 = arith.constant 1 : i32
    %25 = tpu.dynamic_rotate %23 by %c1_i32_13 dim 1 : vector<8x64xf32>, i32 -> vector<8x64xf32>
    %26 = vector.extract_strided_slice %6 {offsets = [0, 0], sizes = [1, 64], strides = [1, 1]} : vector<1x128xi1> to vector<1x64xi1>
    %27 = vector.shape_cast %26 : vector<1x64xi1> to vector<1x64xi1>
    %28 = vector.broadcast %27 : vector<1x64xi1> to vector<8x64xi1>
    %29 = arith.select %28, %24, %25 : vector<8x64xi1>, vector<8x64xf32>
    %30 = vector.extract_strided_slice %7 {offsets = [0, 0], sizes = [8, 64], strides = [1, 1]} : vector<8x128xf32> to vector<8x64xf32>
    %31 = arith.mulf %23, %30 : vector<8x64xf32>
    %32 = vector.extract_strided_slice %8 {offsets = [0, 0], sizes = [8, 64], strides = [1, 1]} : vector<8x128xf32> to vector<8x64xf32>
    %33 = arith.mulf %29, %32 : vector<8x64xf32>
    %34 = arith.addf %31, %33 : vector<8x64xf32>
    %c0_14 = arith.constant 0 : index
    %c0_15 = arith.constant 0 : index
    %c0_16 = arith.constant 0 : index
    %35 = vector.load %arg7[%c0_14, %c0_15, %c0_16] : memref<1x8x64xf32, #tpu.memory_space<vmem>>, vector<1x8x64xf32>
    %36 = vector.shape_cast %35 : vector<1x8x64xf32> to vector<8x64xf32>
    %37 = vector.shape_cast %34 : vector<8x64xf32> to vector<1x8x64xf32>
    tpu.vector_store %arg7[%c0_14, %c0_15, %c0_16], %37 {strides = array<i32>} : memref<1x8x64xf32, #tpu.memory_space<vmem>>, vector<1x8x64xf32>,
    return
  }
  func.func @transform_0(%arg0: i32, %arg1: i32) -> (i32, i32) {
    %c0_i32 = arith.constant 0 : i32
    %c0_i32_0 = arith.constant 0 : i32
    return %arg0, %c0_i32 : i32, i32
  }
  func.func @transform_1(%arg0: i32, %arg1: i32) -> (i32, i32) {
    %c0_i32 = arith.constant 0 : i32
    %c0_i32_0 = arith.constant 0 : i32
    return %arg0, %c0_i32 : i32, i32
  }
  func.func @transform_2(%arg0: i32, %arg1: i32) -> (i32, i32, i32) {
    %c0_i32 = arith.constant 0 : i32
    %c0_i32_0 = arith.constant 0 : i32
    return %arg1, %arg0, %c0_i32 : i32, i32, i32
  }
  func.func @transform_3(%arg0: i32, %arg1: i32) -> (i32, i32, i32) {
    %c0_i32 = arith.constant 0 : i32
    %c0_i32_0 = arith.constant 0 : i32
    return %arg1, %arg0, %c0_i32 : i32, i32, i32
  }
  func.func @transform_4(%arg0: i32, %arg1: i32) -> (i32, i32, i32) {
    %c0_i32 = arith.constant 0 : i32
    %c0_i32_0 = arith.constant 0 : i32
    return %arg1, %arg0, %c0_i32 : i32, i32, i32
  }
  func.func @transform_5(%arg0: i32, %arg1: i32) -> (i32, i32, i32) {
    %c0_i32 = arith.constant 0 : i32
    %c0_i32_0 = arith.constant 0 : i32
    return %arg1, %arg0, %c0_i32 : i32, i32, i32
  }
}

</mosaic_0001>

<llo_original>
// kernel: mul.5
$region0: #{mul.5}
  %s0 = inlined_call_operand.vmem [shape: f32[16,2], index: 0, kind: input, shape index: {}]
  %s1 = inlined_call_operand.vmem [shape: f32[32], index: 1, kind: output, shape index: {}]
  $region1: #{mul.5} parent=0
    #allocation0 [shape = 'u8[4096]{0}', space=vmem, size = 0x1000, scoped, tag = 'scoped mem for output reshape']
    %v2 = vld [vmem:[%s0] sm:$0x1]
    %vm3 = vcmask 15360
    %4 = vst.msk [vmem:[#allocation0] sm:$0x1] %vm3, %v2
    %s5 = scalar_lea.vmem %s0, 15
    %v6 = vld [vmem:[%s5] sm:$0x1]
    %7 = vrot.lane.b32.xlu0 %v6, 30
    %v8 = vpop.permute.xlu0 %7
    %vm9 = vcmask 261360
    %10 = vst.msk [vmem:[#allocation0] sm:$0x1] %vm9, %v8
    %s11 = scalar_lea.vmem %s0, 14
    %v12 = vld [vmem:[%s11] sm:$0x1]
    %13 = vrot.lane.b32.xlu0 %v12, 28
    %v14 = vpop.permute.xlu0 %13
    %vm15 = vcmask 244960
    %16 = vst.msk [vmem:[#allocation0] sm:$0x1] %vm15, %v14
    %s17 = scalar_lea.vmem %s0, 13
    %v18 = vld [vmem:[%s17] sm:$0x1]
    %19 = vrot.lane.b32.xlu0 %v18, 26
    %v20 = vpop.permute.xlu0 %19
    %vm21 = vcmask 228560
    %22 = vst.msk [vmem:[#allocation0] sm:$0x1] %vm21, %v20
    %s23 = scalar_lea.vmem %s0, 12
    %v24 = vld [vmem:[%s23] sm:$0x1]
    %25 = vrot.lane.b32.xlu0 %v24, 24
    %v26 = vpop.permute.xlu0 %25
    %vm27 = vcmask 212160
    %28 = vst.msk [vmem:[#allocation0] sm:$0x1] %vm27, %v26
    %s29 = scalar_lea.vmem %s0, 11
    %v30 = vld [vmem:[%s29] sm:$0x1]
    %31 = vrot.lane.b32.xlu0 %v30, 22
    %v32 = vpop.permute.xlu0 %31
    %vm33 = vcmask 195760
    %34 = vst.msk [vmem:[#allocation0] sm:$0x1] %vm33, %v32
    %s35 = scalar_lea.vmem %s0, 10
    %v36 = vld [vmem:[%s35] sm:$0x1]
    %37 = vrot.lane.b32.xlu0 %v36, 20
    %v38 = vpop.permute.xlu0 %37
    %vm39 = vcmask 179360
    %40 = vst.msk [vmem:[#allocation0] sm:$0x1] %vm39, %v38
    %s41 = scalar_lea.vmem %s0, 9
    %v42 = vld [vmem:[%s41] sm:$0x1]
    %43 = vrot.lane.b32.xlu0 %v42, 18
    %v44 = vpop.permute.xlu0 %43
    %vm45 = vcmask 162960
    %46 = vst.msk [vmem:[#allocation0] sm:$0x1] %vm45, %v44
    %s47 = scalar_lea.vmem %s0, 8
    %v48 = vld [vmem:[%s47] sm:$0x1]
    %49 = vrot.lane.b32.xlu0 %v48, 16
    %v50 = vpop.permute.xlu0 %49
    %vm51 = vcmask 146560
    %52 = vst.msk [vmem:[#allocation0] sm:$0x1] %vm51, %v50
    %s53 = scalar_lea.vmem %s0, 7
    %v54 = vld [vmem:[%s53] sm:$0x1]
    %55 = vrot.lane.b32.xlu0 %v54, 14
    %v56 = vpop.permute.xlu0 %55
    %vm57 = vcmask 130160
    %58 = vst.msk [vmem:[#allocation0] sm:$0x1] %vm57, %v56
    %s59 = scalar_lea.vmem %s0, 6
    %v60 = vld [vmem:[%s59] sm:$0x1]
    %61 = vrot.lane.b32.xlu0 %v60, 12
    %v62 = vpop.permute.xlu0 %61
    %vm63 = vcmask 113760
    %64 = vst.msk [vmem:[#allocation0] sm:$0x1] %vm63, %v62
    %s65 = scalar_lea.vmem %s0, 5
    %v66 = vld [vmem:[%s65] sm:$0x1]
    %67 = vrot.lane.b32.xlu0 %v66, 10
    %v68 = vpop.permute.xlu0 %67
    %vm69 = vcmask 97360
    %70 = vst.msk [vmem:[#allocation0] sm:$0x1] %vm69, %v68
    %s71 = scalar_lea.vmem %s0, 4
    %v72 = vld [vmem:[%s71] sm:$0x1]
    %73 = vrot.lane.b32.xlu0 %v72, 8
    %v74 = vpop.permute.xlu0 %73
    %vm75 = vcmask 80960
    %76 = vst.msk [vmem:[#allocation0] sm:$0x1] %vm75, %v74
    %s77 = scalar_lea.vmem %s0, 3
    %v78 = vld [vmem:[%s77] sm:$0x1]
    %79 = vrot.lane.b32.xlu0 %v78, 6
    %v80 = vpop.permute.xlu0 %79
    %vm81 = vcmask 64560
    %82 = vst.msk [vmem:[#allocation0] sm:$0x1] %vm81, %v80
    %s83 = scalar_lea.vmem %s0, 2
    %v84 = vld [vmem:[%s83] sm:$0x1]
    %85 = vrot.lane.b32.xlu0 %v84, 4
    %v86 = vpop.permute.xlu0 %85
    %vm87 = vcmask 48160
    %88 = vst.msk [vmem:[#allocation0] sm:$0x1] %vm87, %v86
    %s89 = scalar_lea.vmem %s0, 1
    %v90 = vld [vmem:[%s89] sm:$0x1]
    %91 = vrot.lane.b32.xlu0 %v90, 2
    %v92 = vpop.permute.xlu0 %91
    %vm93 = vcmask 31760
    %94 = vst.msk [vmem:[#allocation0] sm:$0x1] %vm93, %v92
    %s96 = sshll.u32 1, 1
    %s97 = ssub.s32 %s96, 1
    %v99 = vld [vmem:[#allocation0] sm:%s97]
    %s100 = sshll.u32 1, 1
    %s101 = ssub.s32 %s100, 1
    %102 = vst [vmem:[%s1] sm:%s101] %v99

// kernel: tile.6
$region0: #{tile.6}
  #allocation0 [shape = 's32[1]{0}', space=sflag, size = 0x4, scoped, tag = 'scoped memory for tile.6']
  %s0 = inlined_call_operand.vmem [shape: f32[2], index: 0, kind: input, shape index: {}]
  %s1 = inlined_call_operand.vmem [shape: f32[16,2], index: 1, kind: output, shape index: {}]
  // Predicated region
  $region2: #{tile.6} parent=0 // pred_check
    _
  $region3: #{tile.6} parent=0 // pred_check_branch
    %3 = sbr.rel (0) target = $region5
  $region4: #{tile.6} parent=0 // pred_region
    _
  $region5: #{tile.6} parent=0 // pred_fallthru
    _
  %v4 = vld [vmem:[%s0] ss:$0 sm:$0xff]
  %5 = vst [vmem:[%s1] sm:$0xff] %v4
  %s6 = scalar_lea.vmem %s1, 8
  %7 = vst [vmem:[%s6] sm:$0xff] %v4

// kernel: vk_rotary_embedding.1
$region0: #{vk_rotary_embedding.1}
  #allocation0 [shape = 'u32[]', space=smem, size = 0x4, offset = 0x4, fixed_abs, tag = 'smem constant byte address 0x4 - core index']
  #allocation1 [shape = 'u32[144,128]{1,0:T(1,128)}', space=vmem, size = 0x12000, scoped, tag = 'internal scratch']
  %s0 = inlined_call_operand.vmem [shape: f32[8,32], index: 0, kind: input, shape index: {}]
  %s1 = inlined_call_operand.vmem [shape: f32[8,32], index: 1, kind: input, shape index: {}]
  %s2 = inlined_call_operand.vmem [shape: f32[2,8,128], index: 2, kind: input, shape index: {}]
  %s3 = inlined_call_operand.vmem [shape: f32[2,8,64], index: 3, kind: input, shape index: {}]
  %s4 = inlined_call_operand.vmem [shape: f32[2,8,128], index: 4, kind: output, shape index: {0}]
  %s5 = inlined_call_operand.vmem [shape: f32[2,8,64], index: 5, kind: output, shape index: {1}]
  %6 = xla_tuple %s4, %s5
  %s7 = sld [smem:[#allocation0]]
  $region57: #{vk_rotary_embedding.1} parent=0
    _
  %s9 = ssub.s32 1, %s7
  %s10 = scalar_select 0, %s9, %s7
  loop: start=0, step=1, limit=4
  $region2: #{vk_rotary_embedding.1} parent=0 // loop_pre_header
    _
  $region3: #{vk_rotary_embedding.1} parent=0 // loop_header
    %s12 = sphi 0, %s16
    %p13 = scmp.ge.s32.totalorder %s12, 4
    %s19 = sphi 0, %s31
    %s20 = sphi 0, %s27
    %s21 = sphi 0, %s19
    %s22 = sphi 0, %s20
    %s23 = sphi 0, %s21
    %s24 = sphi 0, %s22
    %s34 = sphi 0, %s36
    %s37 = sphi 0, %s34
    %s38 = sphi 0, %s37
    %s54 = sphi 0, %s38
    %s60 = sphi 0, %s62
    %s63 = sphi 0, %s60
    %s64 = sphi 0, %s63
    %s80 = sphi 0, %s64
    %s88 = sphi 0, %s90
    %s91 = sphi 0, %s88
    %s92 = sphi 0, %s91
    %s108 = sphi 0, %s92
    %s116 = sphi 0, %s118
    %s119 = sphi 0, %s116
    %s120 = sphi 0, %s119
    %s136 = sphi 0, %s120
    %s144 = sphi 0, %s146
    %s147 = sphi 0, %s144
    %s148 = sphi 0, %s147
    %s164 = sphi 0, %s148
    %s172 = sphi 0, %s174
    %s175 = sphi 0, %s172
    %s176 = sphi 0, %s175
    %s192 = sphi 0, %s176
  $region4: #{vk_rotary_embedding.1} parent=0 // loop_header_branch
    %15 = sbr.rel (%p13) target = $region8
  $region5: #{vk_rotary_embedding.1} parent=0 // loop_body
    %s17 = ssub.s32 %s12, 1
    %s18 = ssub.s32 %s12, 2
    %s25 = sadd.s32 1, %s20
    %p26 = scmp.ge.s32.totalorder %s25, 2
    %s27 = scalar_select %p26, 0, %s25
    %s28 = sadd.s32 1, %s19
    %s29 = scalar_select %p26, %s28, %s19
    %p30 = scmp.ge.s32.totalorder %s29, 1
    %s31 = scalar_select %p30, 0, %s29
    %s32 = ssub.s32 %s19, %s31
    %p33 = scmp.eq.s32.totalorder %s32, 0
    %s35 = sadd.s32 %s34, 1
    %s36 = scalar_select %p33, %s34, %s35
    %p39 = pneg %p33
    %p40 = scmp.eq.s32.totalorder %s12, 1
    %p41 = por %p39, %p40
    %p42 = scmp.ne.s32.totalorder %s34, %s37
    %p43 = scmp.eq.s32.totalorder %s12, 0
    %p44 = por %p42, %p43
    %p45 = scmp.ne.s32.totalorder %s34, %s37
    %p46 = scmp.eq.s32.totalorder %s17, 1
    %p47 = por %p45, %p46
    %p48 = scmp.ne.s32.totalorder %s37, %s38
    %p49 = scmp.eq.s32.totalorder %s17, 0
    %p50 = por %p48, %p49
    %p51 = scmp.ne.s32.totalorder %s37, %s38
    %p52 = scmp.eq.s32.totalorder %s18, 1
    %p53 = por %p51, %p52
    %p55 = scmp.ne.s32.totalorder %s38, %s54
    %p56 = scmp.eq.s32.totalorder %s18, 0
    %p57 = por %p55, %p56
    %s58 = ssub.s32 %s19, %s31
    %p59 = scmp.eq.s32.totalorder %s58, 0
    %s61 = sadd.s32 %s60, 1
    %s62 = scalar_select %p59, %s60, %s61
    %p65 = pneg %p59
    %p66 = scmp.eq.s32.totalorder %s12, 1
    %p67 = por %p65, %p66
    %p68 = scmp.ne.s32.totalorder %s60, %s63
    %p69 = scmp.eq.s32.totalorder %s12, 0
    %p70 = por %p68, %p69
    %p71 = scmp.ne.s32.totalorder %s60, %s63
    %p72 = scmp.eq.s32.totalorder %s17, 1
    %p73 = por %p71, %p72
    %p74 = scmp.ne.s32.totalorder %s63, %s64
    %p75 = scmp.eq.s32.totalorder %s17, 0
    %p76 = por %p74, %p75
    %p77 = scmp.ne.s32.totalorder %s63, %s64
    %p78 = scmp.eq.s32.totalorder %s18, 1
    %p79 = por %p77, %p78
    %p81 = scmp.ne.s32.totalorder %s64, %s80
    %p82 = scmp.eq.s32.totalorder %s18, 0
    %p83 = por %p81, %p82
    %s84 = ssub.s32 %s20, %s27
    %s85 = ssub.s32 %s19, %s31
    %s86 = sor.u32 %s84, %s85
    %p87 = scmp.eq.s32.totalorder %s86, 0
    %s89 = sadd.s32 %s88, 1
    %s90 = scalar_select %p87, %s88, %s89
    %p93 = pneg %p87
    %p94 = scmp.eq.s32.totalorder %s12, 1
    %p95 = por %p93, %p94
    %p96 = scmp.ne.s32.totalorder %s88, %s91
    %p97 = scmp.eq.s32.totalorder %s12, 0
    %p98 = por %p96, %p97
    %p99 = scmp.ne.s32.totalorder %s88, %s91
    %p100 = scmp.eq.s32.totalorder %s17, 1
    %p101 = por %p99, %p100
    %p102 = scmp.ne.s32.totalorder %s91, %s92
    %p103 = scmp.eq.s32.totalorder %s17, 0
    %p104 = por %p102, %p103
    %p105 = scmp.ne.s32.totalorder %s91, %s92
    %p106 = scmp.eq.s32.totalorder %s18, 1
    %p107 = por %p105, %p106
    %p109 = scmp.ne.s32.totalorder %s92, %s108
    %p110 = scmp.eq.s32.totalorder %s18, 0
    %p111 = por %p109, %p110
    %s112 = ssub.s32 %s20, %s27
    %s113 = ssub.s32 %s19, %s31
    %s114 = sor.u32 %s112, %s113
    %p115 = scmp.eq.s32.totalorder %s114, 0
    %s117 = sadd.s32 %s116, 1
    %s118 = scalar_select %p115, %s116, %s117
    %p121 = pneg %p115
    %p122 = scmp.eq.s32.totalorder %s12, 1
    %p123 = por %p121, %p122
    %p124 = scmp.ne.s32.totalorder %s116, %s119
    %p125 = scmp.eq.s32.totalorder %s12, 0
    %p126 = por %p124, %p125
    %p127 = scmp.ne.s32.totalorder %s116, %s119
    %p128 = scmp.eq.s32.totalorder %s17, 1
    %p129 = por %p127, %p128
    %p130 = scmp.ne.s32.totalorder %s119, %s120
    %p131 = scmp.eq.s32.totalorder %s17, 0
    %p132 = por %p130, %p131
    %p133 = scmp.ne.s32.totalorder %s119, %s120
    %p134 = scmp.eq.s32.totalorder %s18, 1
    %p135 = por %p133, %p134
    %p137 = scmp.ne.s32.totalorder %s120, %s136
    %p138 = scmp.eq.s32.totalorder %s18, 0
    %p139 = por %p137, %p138
    %s140 = ssub.s32 %s20, %s27
    %s141 = ssub.s32 %s19, %s31
    %s142 = sor.u32 %s140, %s141
    %p143 = scmp.eq.s32.totalorder %s142, 0
    %s145 = sadd.s32 %s144, 1
    %s146 = scalar_select %p143, %s144, %s145
    %p149 = pneg %p143
    %p150 = scmp.eq.s32.totalorder %s12, 1
    %p151 = por %p149, %p150
    %p152 = scmp.ne.s32.totalorder %s144, %s147
    %p153 = scmp.eq.s32.totalorder %s12, 0
    %p154 = por %p152, %p153
    %p155 = scmp.ne.s32.totalorder %s144, %s147
    %p156 = scmp.eq.s32.totalorder %s17, 1
    %p157 = por %p155, %p156
    %p158 = scmp.ne.s32.totalorder %s147, %s148
    %p159 = scmp.eq.s32.totalorder %s17, 0
    %p160 = por %p158, %p159
    %p161 = scmp.ne.s32.totalorder %s147, %s148
    %p162 = scmp.eq.s32.totalorder %s18, 1
    %p163 = por %p161, %p162
    %p165 = scmp.ne.s32.totalorder %s148, %s164
    %p166 = scmp.eq.s32.totalorder %s18, 0
    %p167 = por %p165, %p166
    %s168 = ssub.s32 %s20, %s27
    %s169 = ssub.s32 %s19, %s31
    %s170 = sor.u32 %s168, %s169
    %p171 = scmp.eq.s32.totalorder %s170, 0
    %s173 = sadd.s32 %s172, 1
    %s174 = scalar_select %p171, %s172, %s173
    %p177 = pneg %p171
    %p178 = scmp.eq.s32.totalorder %s12, 1
    %p179 = por %p177, %p178
    %p180 = scmp.ne.s32.totalorder %s172, %s175
    %p181 = scmp.eq.s32.totalorder %s12, 0
    %p182 = por %p180, %p181
    %p183 = scmp.ne.s32.totalorder %s172, %s175
    %p184 = scmp.eq.s32.totalorder %s17, 1
    %p185 = por %p183, %p184
    %p186 = scmp.ne.s32.totalorder %s175, %s176
    %p187 = scmp.eq.s32.totalorder %s17, 0
    %p188 = por %p186, %p187
    %p189 = scmp.ne.s32.totalorder %s175, %s176
    %p190 = scmp.eq.s32.totalorder %s18, 1
    %p191 = por %p189, %p190
    %p193 = scmp.ne.s32.totalorder %s176, %s192
    %p194 = scmp.eq.s32.totalorder %s18, 0
    %p195 = por %p193, %p194
    %p196 = scmp.le.s32.totalorder 1, %s12
    %p197 = scmp.lt.s32.totalorder %s12, 3
    %p198 = pnand %p196, %p197
    %p199 = pneg %p198
    // Predicated region
    $region9: #{vk_rotary_embedding.1} parent=5 // pred_check
      _
    $region10: #{vk_rotary_embedding.1} parent=5 // pred_check_branch
      %201 = sbr.rel (%p198) target = $region12
    $region11: #{vk_rotary_embedding.1} parent=5 // pred_region
      %s202 = ssub.s32 %s12, 1
      // Predicated region
      $region13: #{vk_rotary_embedding.1} parent=11 // pred_check
        %p203 = pneg %p50
      $region14: #{vk_rotary_embedding.1} parent=11 // pred_check_branch
        %205 = sbr.rel (%p203) target = $region16
      $region15: #{vk_rotary_embedding.1} parent=11 // pred_region
        %p206 = scmp.lt.s32.totalorder %s21, 0
        %s207 = scalar_select %p206, %s21, 0
        %s208 = smul.addr %s207, 8
        %s209 = scalar_lea.vmem %s0, %s208
      $region16: #{vk_rotary_embedding.1} parent=11 // pred_fallthru
        _
      // Predicated region
      $region17: #{vk_rotary_embedding.1} parent=11 // pred_check
        %p210 = pneg %p76
      $region18: #{vk_rotary_embedding.1} parent=11 // pred_check_branch
        %212 = sbr.rel (%p210) target = $region20
      $region19: #{vk_rotary_embedding.1} parent=11 // pred_region
        %p213 = scmp.lt.s32.totalorder %s21, 0
        %s214 = scalar_select %p213, %s21, 0
        %s215 = smul.addr %s214, 8
        %s216 = scalar_lea.vmem %s1, %s215
      $region20: #{vk_rotary_embedding.1} parent=11 // pred_fallthru
        _
    $region12: #{vk_rotary_embedding.1} parent=5 // pred_fallthru
      _
    %p217 = scmp.lt.s32.totalorder %s12, 2
    // Predicated region
    $region21: #{vk_rotary_embedding.1} parent=5 // pred_check
      %p218 = pneg %p217
    $region22: #{vk_rotary_embedding.1} parent=5 // pred_check_branch
      %220 = sbr.rel (%p218) target = $region24
    $region23: #{vk_rotary_embedding.1} parent=5 // pred_region
      // Predicated region
      $region25: #{vk_rotary_embedding.1} parent=23 // pred_check
        %p221 = pneg %p98
      $region26: #{vk_rotary_embedding.1} parent=23 // pred_check_branch
        %223 = sbr.rel (%p221) target = $region28
      $region27: #{vk_rotary_embedding.1} parent=23 // pred_region
        %p224 = scmp.lt.s32.totalorder %s20, 1
        %s225 = scalar_select %p224, %s20, 1
        %p226 = scmp.lt.s32.totalorder %s19, 0
        %s227 = scalar_select %p226, %s19, 0
        %s228 = sadd.s32 %s227, %s225
        %s229 = smul.addr %s228, 8
        %s230 = scalar_lea.vmem %s2, %s229
      $region28: #{vk_rotary_embedding.1} parent=23 // pred_fallthru
        _
      // Predicated region
      $region29: #{vk_rotary_embedding.1} parent=23 // pred_check
        %p231 = pneg %p126
      $region30: #{vk_rotary_embedding.1} parent=23 // pred_check_branch
        %233 = sbr.rel (%p231) target = $region32
      $region31: #{vk_rotary_embedding.1} parent=23 // pred_region
        %p234 = scmp.lt.s32.totalorder %s20, 1
        %s235 = scalar_select %p234, %s20, 1
        %p236 = scmp.lt.s32.totalorder %s19, 0
        %s237 = scalar_select %p236, %s19, 0
        %s238 = sadd.s32 %s237, %s235
        %s239 = smul.addr %s238, 8
        %s240 = scalar_lea.vmem %s3, %s239
      $region32: #{vk_rotary_embedding.1} parent=23 // pred_fallthru
        _
    $region24: #{vk_rotary_embedding.1} parent=5 // pred_fallthru
      _
    %p241 = scmp.le.s32.totalorder 1, %s12
    %p242 = scmp.lt.s32.totalorder %s12, 3
    %p243 = pnand %p241, %p242
    %p244 = pneg %p243
    // Predicated region
    $region33: #{vk_rotary_embedding.1} parent=5 // pred_check
      _
    $region34: #{vk_rotary_embedding.1} parent=5 // pred_check_branch
      %246 = sbr.rel (%p243) target = $region36
    $region35: #{vk_rotary_embedding.1} parent=5 // pred_region
      %s247 = ssub.s32 %s12, 1
      %p248 = scmp.lt.s32.totalorder %s21, 0
      %s249 = scalar_select %p248, %s21, 0
      %s250 = smul.addr %s249, 8
      %s251 = scalar_lea.vmem %s0, %s250
      %p252 = pneg %p50
      %p253 = pneg %p47
      %p254 = scmp.lt.s32.totalorder %s21, 0
      %s255 = scalar_select %p254, %s21, 0
      %s256 = smul.addr %s255, 8
      %s257 = scalar_lea.vmem %s1, %s256
      %p258 = pneg %p76
      %p259 = pneg %p73
      %p260 = scmp.lt.s32.totalorder %s22, 1
      %s261 = scalar_select %p260, %s22, 1
      %p262 = scmp.lt.s32.totalorder %s21, 0
      %s263 = scalar_select %p262, %s21, 0
      %s264 = sadd.s32 %s263, %s261
      %s265 = smul.addr %s264, 8
      %s266 = scalar_lea.vmem %s2, %s265
      %p267 = pneg %p104
      %p268 = pneg %p101
      %p269 = scmp.lt.s32.totalorder %s22, 1
      %s270 = scalar_select %p269, %s22, 1
      %p271 = scmp.lt.s32.totalorder %s21, 0
      %s272 = scalar_select %p271, %s21, 0
      %s273 = sadd.s32 %s272, %s270
      %s274 = smul.addr %s273, 8
      %s275 = scalar_lea.vmem %s3, %s274
      %p276 = pneg %p132
      %p277 = pneg %p129
      %p278 = pneg %p160
      %p279 = pneg %p157
      %p280 = scmp.lt.s32.totalorder %s22, 1
      %s281 = scalar_select %p280, %s22, 1
      %p282 = scmp.lt.s32.totalorder %s21, 0
      %s283 = scalar_select %p282, %s21, 0
      %s284 = sadd.s32 %s283, %s281
      %s285 = smul.addr %s284, 8
      %s286 = scalar_lea.vmem %s4, %s285
      %p287 = pneg %p188
      %p288 = pneg %p185
      %p289 = scmp.lt.s32.totalorder %s22, 1
      %s290 = scalar_select %p289, %s22, 1
      %p291 = scmp.lt.s32.totalorder %s21, 0
      %s292 = scalar_select %p291, %s21, 0
      %s293 = sadd.s32 %s292, %s290
      %s294 = smul.addr %s293, 8
      %s295 = scalar_lea.vmem %s5, %s294
      %p296 = scmp.lt.s32.totalorder %s21, 0
      %s297 = scalar_select %p296, %s21, 0
      %s298 = smul.addr %s297, 8
      %s299 = scalar_lea.vmem %s0, %s298
      %p300 = scmp.lt.s32.totalorder %s21, 0
      %s301 = scalar_select %p300, %s21, 0
      %s302 = smul.addr %s301, 8
      %s303 = scalar_lea.vmem %s1, %s302
      %p304 = scmp.lt.s32.totalorder %s22, 1
      %s305 = scalar_select %p304, %s22, 1
      %p306 = scmp.lt.s32.totalorder %s21, 0
      %s307 = scalar_select %p306, %s21, 0
      %s308 = sadd.s32 %s307, %s305
      %s309 = smul.addr %s308, 8
      %s310 = scalar_lea.vmem %s2, %s309
      %p311 = scmp.lt.s32.totalorder %s22, 1
      %s312 = scalar_select %p311, %s22, 1
      %p313 = scmp.lt.s32.totalorder %s21, 0
      %s314 = scalar_select %p313, %s21, 0
      %s315 = sadd.s32 %s314, %s312
      %s316 = smul.addr %s315, 8
      %s317 = scalar_lea.vmem %s3, %s316
      %p318 = scmp.lt.s32.totalorder %s22, 1
      %s319 = scalar_select %p318, %s22, 1
      %p320 = scmp.lt.s32.totalorder %s21, 0
      %s321 = scalar_select %p320, %s21, 0
      %s322 = sadd.s32 %s321, %s319
      %s323 = smul.addr %s322, 8
      %s324 = scalar_lea.vmem %s4, %s323
      %p325 = scmp.lt.s32.totalorder %s22, 1
      %s326 = scalar_select %p325, %s22, 1
      %p327 = scmp.lt.s32.totalorder %s21, 0
      %s328 = scalar_select %p327, %s21, 0
      %s329 = sadd.s32 %s328, %s326
      %s330 = smul.addr %s329, 8
      %s331 = scalar_lea.vmem %s5, %s330
      %v332 = vld [vmem:[%s299] sm:$0xff]
      %v333 = vld [vmem:[%s303] sm:$0xff]
      %v334 = vlaneseq
      %v335 = vand.u32 %v334, 127
      %v336 = vand.u32 %v335, 1
      %vm337 = vcmp.eq.s32.totalorder %v336, 0
      %339 = vrot.lane.b32.xlu0 %v332, 32
      %v340 = vpop.permute.xlu0 %339
      %342 = vrot.lane.b32.xlu0 %v332, 64
      %v343 = vpop.permute.xlu0 %342
      %345 = vrot.lane.b32.xlu0 %v332, 96
      %v346 = vpop.permute.xlu0 %345
      %vm348 = vcmask 261120
      %v349 = vsel %vm348, %v332, %v340
      %vm350 = vcmask 523264
      %v351 = vsel %vm350, %v349, %v343
      %vm352 = vcmask 785408
      %v353 = vsel %vm352, %v351, %v346
      %355 = vrot.lane.b32.xlu0 %v333, 32
      %v356 = vpop.permute.xlu0 %355
      %358 = vrot.lane.b32.xlu0 %v333, 64
      %v359 = vpop.permute.xlu0 %358
      %361 = vrot.lane.b32.xlu0 %v333, 96
      %v362 = vpop.permute.xlu0 %361
      %v364 = vsel %vm348, %v333, %v356
      %v365 = vsel %vm350, %v364, %v359
      %v366 = vsel %vm352, %v365, %v362
      %v367 = vld [vmem:[%s310] sm:$0xff]
      %368 = vrot.lane.b32.xlu0 %v367, 127
      %v369 = vpop.permute.xlu0 %368
      %370 = vrot.lane.b32.xlu0 %v367, 1
      %v371 = vpop.permute.xlu0 %370
      %v372 = vsel %vm337, 1, 0
      %vm373 = vcmp.eq.s32.totalorder %v372, 1
      %v374 = vsel %vm373, %v369, %v371
      %v375 = vmul.f32 %v367, %v353
      %v376 = vmul.f32 %v374, %v366
      %v377 = vadd.f32 %v375, %v376
      %378 = vst [vmem:[%s324] sm:$0xff] %v377
      %v379 = vld [vmem:[%s317] sm:$0xff]
      %vm380 = vcmask 1048064
      %381 = vrot.lane.b32.xlu0 %v379, 64
      %v382 = vpop.permute.xlu0 %381
      %v383 = vsel %vm380, %v382, %v379
      %384 = vrot.lane.b32.xlu0 %v383, 64
      %v385 = vpop.permute.xlu0 %384
      %v386 = vsel %vm380, %v385, %v379
      %388 = vrot.lane.b32.xlu0 %v386, 127
      %v389 = vpop.permute.xlu0 %388
      %391 = vrot.lane.b32.xlu0 %v386, 65
      %v392 = vpop.permute.xlu0 %391
      %v394 = vsel %vm373, %v389, %v392
      %v395 = vmul.f32 %v379, %v353
      %v396 = vmul.f32 %v394, %v366
      %v397 = vadd.f32 %v395, %v396
      %398 = vst.msk [vmem:[%s331] sm:$0xff] %vm350, %v397
      %p399 = scmp.lt.s32.totalorder %s22, 1
      %s400 = scalar_select %p399, %s22, 1
      %p401 = scmp.lt.s32.totalorder %s21, 0
      %s402 = scalar_select %p401, %s21, 0
      %s403 = sadd.s32 %s402, %s400
      %s404 = smul.addr %s403, 8
      %s405 = scalar_lea.vmem %s4, %s404
      %p406 = scmp.lt.s32.totalorder %s22, 1
      %s407 = scalar_select %p406, %s22, 1
      %p408 = scmp.lt.s32.totalorder %s21, 0
      %s409 = scalar_select %p408, %s21, 0
      %s410 = sadd.s32 %s409, %s407
      %s411 = smul.addr %s410, 8
      %s412 = scalar_lea.vmem %s5, %s411
      // Predicated region
      $region37: #{vk_rotary_embedding.1} parent=35 // pred_check
        %p413 = pneg %p157
      $region38: #{vk_rotary_embedding.1} parent=35 // pred_check_branch
        %415 = sbr.rel (%p413) target = $region40
      $region39: #{vk_rotary_embedding.1} parent=35 // pred_region
        _
      $region40: #{vk_rotary_embedding.1} parent=35 // pred_fallthru
        _
      // Predicated region
      $region41: #{vk_rotary_embedding.1} parent=35 // pred_check
        %p416 = pneg %p185
      $region42: #{vk_rotary_embedding.1} parent=35 // pred_check_branch
        %418 = sbr.rel (%p416) target = $region44
      $region43: #{vk_rotary_embedding.1} parent=35 // pred_region
        _
      $region44: #{vk_rotary_embedding.1} parent=35 // pred_fallthru
        _
    $region36: #{vk_rotary_embedding.1} parent=5 // pred_fallthru
      _
    %p419 = scmp.le.s32.totalorder 2, %s12
    // Predicated region
    $region45: #{vk_rotary_embedding.1} parent=5 // pred_check
      %p420 = pneg %p419
    $region46: #{vk_rotary_embedding.1} parent=5 // pred_check_branch
      %422 = sbr.rel (%p420) target = $region48
    $region47: #{vk_rotary_embedding.1} parent=5 // pred_region
      %s423 = ssub.s32 %s12, 2
      // Predicated region
      $region49: #{vk_rotary_embedding.1} parent=47 // pred_check
        %p424 = pneg %p163
      $region50: #{vk_rotary_embedding.1} parent=47 // pred_check_branch
        %426 = sbr.rel (%p424) target = $region52
      $region51: #{vk_rotary_embedding.1} parent=47 // pred_region
        %p427 = scmp.lt.s32.totalorder %s24, 1
        %s428 = scalar_select %p427, %s24, 1
        %p429 = scmp.lt.s32.totalorder %s23, 0
        %s430 = scalar_select %p429, %s23, 0
        %s431 = sadd.s32 %s430, %s428
        %s432 = smul.addr %s431, 8
        %s433 = scalar_lea.vmem %s4, %s432
      $region52: #{vk_rotary_embedding.1} parent=47 // pred_fallthru
        _
      // Predicated region
      $region53: #{vk_rotary_embedding.1} parent=47 // pred_check
        %p434 = pneg %p191
      $region54: #{vk_rotary_embedding.1} parent=47 // pred_check_branch
        %436 = sbr.rel (%p434) target = $region56
      $region55: #{vk_rotary_embedding.1} parent=47 // pred_region
        %p437 = scmp.lt.s32.totalorder %s24, 1
        %s438 = scalar_select %p437, %s24, 1
        %p439 = scmp.lt.s32.totalorder %s23, 0
        %s440 = scalar_select %p439, %s23, 0
        %s441 = sadd.s32 %s440, %s438
        %s442 = smul.addr %s441, 8
        %s443 = scalar_lea.vmem %s5, %s442
      $region56: #{vk_rotary_embedding.1} parent=47 // pred_fallthru
        _
    $region48: #{vk_rotary_embedding.1} parent=5 // pred_fallthru
      _
  $region6: #{vk_rotary_embedding.1} parent=0 // loop_footer
    %s16 = sadd.s32 1, %s12
  $region7: #{vk_rotary_embedding.1} parent=0 // loop_footer_branch
    %11 = sbr.rel target = $region3
  $region8: #{vk_rotary_embedding.1} parent=0 // loop_exit
    _

</llo_original>
